<compile_context>
chip_gen: v7x
topology: tpu7x:2x2x1
jax: 0.10.0
libtpu: 0.0.40
codegen_flags: <defaults>
</compile_context>

<pallas_src>
import jax
import jax.numpy as jnp
from jax.experimental import pallas as pl
from jax.experimental.pallas import tpu as pltpu


# ----------------------------------------------------------------------------
# Generation-aware VMEM budget
# ----------------------------------------------------------------------------
def _vmem_capacity_bytes():
    try:
        return int(pltpu.get_tpu_info().vmem_capacity_bytes)
    except Exception:
        return 64 << 20  # conservative fallback: v7x has 64 MiB per TensorCore


_VMEM_CAP = _vmem_capacity_bytes()
_VMEM_LIMIT = int(_VMEM_CAP * 0.75)   # scoped-VMEM limit requested from Mosaic
_VMEM_BUDGET = int(_VMEM_CAP * 0.55)  # what our own residency estimate may use


def _round_up(x, m):
    return ((x + m - 1) // m) * m


# ----------------------------------------------------------------------------
# Kernel 1: tiled dense linear layer  y = x @ W_t + b   (W_t pre-transposed)
# ----------------------------------------------------------------------------
def _plan_dim(dim, candidates, align, full_limit):
    """Return (padded_dim, tile): MXU-aligned divisor, or full dim when small,
    or zero-pad large ragged dims instead of a full-dim VMEM-cliff block."""
    for c in candidates:
        if dim % c == 0:
            return dim, c
    if dim <= full_limit:
        return dim, dim
    padded = _round_up(dim, align)
    for c in candidates:
        if padded % c == 0:
            return padded, c
    return padded, align


def _linear_kernel(x_ref, w_ref, b_ref, o_ref, acc_ref):
    @pl.when(pl.program_id(2) == 0)
    def _():
        acc_ref[...] = jnp.zeros_like(acc_ref)

    acc_ref[...] += jnp.dot(
        x_ref[...], w_ref[...], preferred_element_type=jnp.float32
    )

    @pl.when(pl.program_id(2) == pl.num_programs(2) - 1)
    def _():
        o_ref[...] = (acc_ref[...] + b_ref[...].astype(jnp.float32)).astype(o_ref.dtype)


def linear_pallas(x, w_t, b, out_dtype=None):
    """x: (M, K), w_t: (K, N), b: (N,) -> (M, N)."""
    out_dtype = out_dtype or x.dtype
    m, k = x.shape
    n = w_t.shape[1]
    mp, tm = _plan_dim(m, (1024, 512, 256, 128), 128, 1024)
    np_, tn = _plan_dim(n, (512, 256, 128), 256, 512)
    kp, tk = _plan_dim(k, (512, 256, 128), 256, 512)
    if (mp, kp) != (m, k):
        x = jnp.pad(x, ((0, mp - m), (0, kp - k)))
    if (kp, np_) != (k, n):
        w_t = jnp.pad(w_t, ((0, kp - k), (0, np_ - n)))
    if np_ != n:
        b = jnp.pad(b, (0, np_ - n))

    out = pl.pallas_call(
        _linear_kernel,
        out_shape=jax.ShapeDtypeStruct((mp, np_), out_dtype),
        grid=(mp // tm, np_ // tn, kp // tk),
        in_specs=[
            pl.BlockSpec((tm, tk), lambda i, j, kk: (i, kk)),
            pl.BlockSpec((tk, tn), lambda i, j, kk: (kk, j)),
            pl.BlockSpec((1, tn), lambda i, j, kk: (0, j)),
        ],
        out_specs=pl.BlockSpec((tm, tn), lambda i, j, kk: (i, j)),
        scratch_shapes=[pltpu.VMEM((tm, tn), jnp.float32)],
        compiler_params=pltpu.CompilerParams(
            dimension_semantics=("parallel", "parallel", "arbitrary"),
            vmem_limit_bytes=_VMEM_LIMIT,
        ),
    )(x, w_t, b.reshape(1, np_))
    if (mp, np_) != (m, n):
        out = out[:m, :n]
    return out


# ----------------------------------------------------------------------------
# Kernel 2: scaled-dot-product attention with the head layout fused into the
#           BlockSpecs (inputs (L, B, pack, H, Dh), output (T, B, H, Dh)).
# ----------------------------------------------------------------------------
def _attn_vmem_bytes(hblk, t, s_kv, dh, in_bytes, out_bytes, need_weights):
    io = 2 * hblk * t * dh * (in_bytes + out_bytes)      # q in + o out, dbl-buffered
    io += 2 * 2 * hblk * s_kv * dh * in_bytes            # k + v, dbl-buffered
    tmp = 2 * hblk * t * s_kv * 4                        # per-head score/p f32 temps
    if need_weights:
        io += 2 * hblk * t * s_kv * 4                    # (B*H,T,S) f32 weights out
    else:
        tmp += hblk * t * (dh + 2 * 128) * 4             # acc + lane-padded m/l scratch
    return io + tmp


def _pick_head_block(num_heads, bsz, t, s_kv, dh, in_bytes, out_bytes,
                     need_weights, budget_bytes):
    # legal head blocks keep the (sublane, lane) = (hblk, Dh) block (8,128)-safe
    legal = [h for h in range(num_heads, 0, -1)
             if num_heads % h == 0 and (h == num_heads or h % 8 == 0)]
    fits = [h for h in legal
            if _attn_vmem_bytes(h, t, s_kv, dh, in_bytes, out_bytes,
                                need_weights) <= budget_bytes]
    if not fits:
        # TODO(synk): for very long sequences the need_weights=True path cannot
        # avoid an O(T*S) block; tile T as well if this ever triggers.
        return legal[-1]
    best = fits[0]
    if bsz == 1 and best == num_heads:
        # keep >=2 grid steps so both v7x TensorCores get work
        smaller = [h for h in fits if h < num_heads]
        if smaller:
            best = smaller[0]
    return best


def _pick_seq_tile(s, candidates=(512, 256, 128)):
    for c in candidates:
        if s % c == 0:
            return c
    # TODO(synk): pad/mask ragged long S instead of taking the full extent.
    return s


def _attn_weights_kernel(q_ref, k_ref, v_ref, o_ref, w_ref):
    # q_ref: (T, hblk, Dh), k_ref/v_ref: (S, hblk, Dh) -- heads unpacked by the
    # BlockSpecs straight out of the projection layout (no HBM transposes).
    hblk = q_ref.shape[1]
    for i in range(hblk):                       # unrolled at trace time
        q = q_ref[:, i, :]                      # (T, Dh), scaling pre-folded
        k = k_ref[:, i, :]                      # (S, Dh)
        v = v_ref[:, i, :]                      # (S, Dh)
        s = jax.lax.dot_general(
            q, k, (((1,), (1,)), ((), ())),     # q @ k^T without materializing k.T
            preferred_element_type=jnp.float32)  # (T, S)
        m = jnp.max(s, axis=-1, keepdims=True)
        p = jnp.exp(s - m)
        # exact divide: these weights are returned to the user (PyTorch parity)
        p = p / jnp.sum(p, axis=-1, keepdims=True)
        w_ref[i] = p.astype(w_ref.dtype)
        o = jnp.dot(p.astype(v.dtype), v, preferred_element_type=jnp.float32)
        o_ref[:, i, :] = o.astype(o_ref.dtype)
        # TODO(synk): output store lane width is Dh (<128); write a merged
        # (T, B, E) slab when hblk == H to make stores fully lane-dense.


def _attn_flash_kernel(q_ref, k_ref, v_ref, o_ref, m_sc, l_sc, acc_sc):
    # need_weights=False path: online softmax over S tiles (innermost grid axis)
    hblk = q_ref.shape[1]
    kk = pl.program_id(2)

    @pl.when(kk == 0)
    def _():
        m_sc[...] = jnp.full(m_sc.shape, -jnp.inf, jnp.float32)
        l_sc[...] = jnp.zeros(l_sc.shape, jnp.float32)
        acc_sc[...] = jnp.zeros(acc_sc.shape, jnp.float32)

    for i in range(hblk):
        q = q_ref[:, i, :]                      # (T, Dh)
        k = k_ref[:, i, :]                      # (ts, Dh)
        v = v_ref[:, i, :]
        s = jax.lax.dot_general(
            q, k, (((1,), (1,)), ((), ())),
            preferred_element_type=jnp.float32)  # (T, ts)
        m_prev = m_sc[i]                         # (T, 1)
        m_new = jnp.maximum(m_prev, jnp.max(s, axis=-1, keepdims=True))
        alpha = jnp.exp(m_prev - m_new)
        p = jnp.exp(s - m_new)
        l_sc[i] = alpha * l_sc[i] + jnp.sum(p, axis=-1, keepdims=True)
        acc_sc[i] = alpha * acc_sc[i] + jnp.dot(
            p.astype(v.dtype), v, preferred_element_type=jnp.float32)
        m_sc[i] = m_new

    @pl.when(kk == pl.num_programs(2) - 1)
    def _():
        for i in range(hblk):
            # post-matmul normalization: (T, Dh) multiply instead of (T, S)
            o = acc_sc[i] * pl.reciprocal(l_sc[i], approx=True)
            o_ref[:, i, :] = o.astype(o_ref.dtype)


def attention_pallas(q5, k5, v5, q_idx, k_idx, v_idx, need_weights, out_dtype,
                     weights_dtype=jnp.float32):
    """q5: (T, B, Pq, H, Dh), k5/v5: (S, B, Pk, H, Dh); *_idx selects the packed
    q/k/v chunk of a fused projection.  Scaling already folded into q weights.
    Returns out4 (T, B, H, Dh) [free reshape to (T*B, E)] and optionally the
    (B*H, T, S) softmax weights."""
    t, bsz, _, nh, dh = q5.shape
    s = k5.shape[0]
    in_bytes = q5.dtype.itemsize
    out_bytes = jax.dtypes.canonicalize_dtype(out_dtype).itemsize

    if need_weights:
        hblk = _pick_head_block(nh, bsz, t, s, dh, in_bytes, out_bytes,
                                True, _VMEM_BUDGET)
        nhb = nh // hblk
        out4, w3 = pl.pallas_call(
            _attn_weights_kernel,
            out_shape=(
                jax.ShapeDtypeStruct((t, bsz, nh, dh), out_dtype),
                jax.ShapeDtypeStruct((bsz * nh, t, s), weights_dtype),
            ),
            grid=(bsz, nhb),
            in_specs=[
                pl.BlockSpec((t, None, None, hblk, dh),
                             lambda b, g, p=q_idx: (0, b, p, g, 0)),
                pl.BlockSpec((s, None, None, hblk, dh),
                             lambda b, g, p=k_idx: (0, b, p, g, 0)),
                pl.BlockSpec((s, None, None, hblk, dh),
                             lambda b, g, p=v_idx: (0, b, p, g, 0)),
            ],
            out_specs=(
                pl.BlockSpec((t, None, hblk, dh), lambda b, g: (0, b, g, 0)),
                pl.BlockSpec((hblk, t, s), lambda b, g, n=nhb: (b * n + g, 0, 0)),
            ),
            compiler_params=pltpu.CompilerParams(
                dimension_semantics=("parallel", "parallel"),
                vmem_limit_bytes=_VMEM_LIMIT,
            ),
        )(q5, k5, v5)
        return out4, w3

    ts = _pick_seq_tile(s)
    hblk = _pick_head_block(nh, bsz, t, ts, dh, in_bytes, out_bytes,
                            False, _VMEM_BUDGET)
    nhb = nh // hblk
    out4 = pl.pallas_call(
        _attn_flash_kernel,
        out_shape=jax.ShapeDtypeStruct((t, bsz, nh, dh), out_dtype),
        grid=(bsz, nhb, s // ts),
        in_specs=[
            pl.BlockSpec((t, None, None, hblk, dh),
                         lambda b, g, kk, p=q_idx: (0, b, p, g, 0)),
            pl.BlockSpec((ts, None, None, hblk, dh),
                         lambda b, g, kk, p=k_idx: (kk, b, p, g, 0)),
            pl.BlockSpec((ts, None, None, hblk, dh),
                         lambda b, g, kk, p=v_idx: (kk, b, p, g, 0)),
        ],
        out_specs=pl.BlockSpec((t, None, hblk, dh),
                               lambda b, g, kk: (0, b, g, 0)),
        scratch_shapes=[
            pltpu.VMEM((hblk, t, 1), jnp.float32),   # running max
            pltpu.VMEM((hblk, t, 1), jnp.float32),   # running denom
            pltpu.VMEM((hblk, t, dh), jnp.float32),  # output accumulator
        ],
        compiler_params=pltpu.CompilerParams(
            dimension_semantics=("parallel", "parallel", "arbitrary"),
            vmem_limit_bytes=_VMEM_LIMIT,
        ),
    )(q5, k5, v5)
    return out4, None


# ----------------------------------------------------------------------------
# Module wrapper
# ----------------------------------------------------------------------------
class MultiheadAttentionPallas:
    """Forward-only JAX/Pallas port of the VariationalTransformer
    MultiheadAttention (attn_mask=None, key_padding_mask=None, dropout_p=0.0)."""

    def __init__(self, embed_dim, num_heads, key, bias=True):
        self.embed_dim = embed_dim
        self.num_heads = num_heads
        self.head_dim = embed_dim // num_heads
        assert self.head_dim * num_heads == embed_dim
        e = embed_dim

        k1, k2 = jax.random.split(key)
        bound = (1.0 / e) ** 0.5  # xavier-fan-in-ish deterministic init
        self.in_proj_weight = jax.random.uniform(
            k1, (3 * e, e), jnp.float32, -bound, bound)
        self.in_proj_bias = jnp.zeros((3 * e,), jnp.float32)
        self.out_proj_weight = jax.random.uniform(
            k2, (e, e), jnp.float32, -bound, bound)
        self.out_proj_bias = jnp.zeros((e,), jnp.float32)

        # Pre-transpose the weights once and fold the 1/sqrt(head_dim) scaling
        # into the q chunk so the attention kernel never multiplies by it.
        scaling = float(self.head_dim) ** -0.5
        scale_vec = jnp.concatenate(
            [jnp.full((e,), scaling, jnp.float32), jnp.ones((2 * e,), jnp.float32)])
        self.in_proj_w_t = jnp.asarray(self.in_proj_weight.T) * scale_vec[None, :]
        self.in_proj_b = self.in_proj_bias * scale_vec
        self.out_proj_w_t = jnp.asarray(self.out_proj_weight.T)

    def __call__(self, query, key, value, need_weights=True):
        tgt_len, bsz, e = query.shape
        src_len = key.shape[0]
        assert e == self.embed_dim
        h, dh = self.num_heads, self.head_dim

        if query is key and key is value:
            # self-attention: one fused projection.  The (L,B,3,H,Dh) view of
            # its output is a free reshape, and the attention BlockSpecs pull
            # q/k/v head blocks straight out of it (no HBM split/transpose).
            x2d = query.reshape(tgt_len * bsz, e)
            qkv = linear_pallas(x2d, self.in_proj_w_t, self.in_proj_b)
            qkv5 = qkv.reshape(tgt_len, bsz, 3, h, dh)
            q5, k5, v5 = qkv5, qkv5, qkv5
            qi, ki, vi = 0, 1, 2
        else:
            # cross-attention (identity check stands in for torch.equal; the
            # key-is-value branch of the reference computes identical values).
            q5 = linear_pallas(query.reshape(tgt_len * bsz, e),
                               self.in_proj_w_t[:, :e], self.in_proj_b[:e]
                               ).reshape(tgt_len, bsz, 1, h, dh)
            if key is value:
                kv = linear_pallas(key.reshape(src_len * bsz, e),
                                   self.in_proj_w_t[:, e:], self.in_proj_b[e:]
                                   ).reshape(src_len, bsz, 2, h, dh)
                k5, v5, ki, vi = kv, kv, 0, 1
            else:
                k5 = linear_pallas(key.reshape(src_len * bsz, e),
                                   self.in_proj_w_t[:, e:2 * e],
                                   self.in_proj_b[e:2 * e]
                                   ).reshape(src_len, bsz, 1, h, dh)
                v5 = linear_pallas(value.reshape(src_len * bsz, e),
                                   self.in_proj_w_t[:, 2 * e:],
                                   self.in_proj_b[2 * e:]
                                   ).reshape(src_len, bsz, 1, h, dh)
                ki, vi = 0, 0
            qi = 0

        out4, w3 = attention_pallas(q5, k5, v5, qi, ki, vi, need_weights,
                                    out_dtype=query.dtype)

        # (T, B, H, Dh) -> (T*B, E) is a free, contiguous reshape.
        out = linear_pallas(out4.reshape(tgt_len * bsz, e),
                            self.out_proj_w_t, self.out_proj_bias)
        out = out.reshape(tgt_len, bsz, e)

        # TODO(synk): attn_mask / key_padding_mask / dropout(training) branches
        # are not exercised here (None / p=0.0); add an additive-mask input to
        # the attention kernels when needed.
        if need_weights:
            return out, w3
        return out, None


# ----------------------------------------------------------------------------
# Pure-JAX reference (self-attention) for a sanity check
# ----------------------------------------------------------------------------
def reference_forward(mod, x):
    tgt_len, bsz, e = x.shape
    h, dh = mod.num_heads, mod.head_dim
    scaling = float(dh) ** -0.5
    qkv = x @ mod.in_proj_weight.T + mod.in_proj_bias
    q, k, v = jnp.split(qkv, 3, axis=-1)
    q = q * scaling
    q = q.reshape(tgt_len, bsz * h, dh).transpose(1, 0, 2)
    k = k.reshape(tgt_len, bsz * h, dh).transpose(1, 0, 2)
    v = v.reshape(tgt_len, bsz * h, dh).transpose(1, 0, 2)
    s = jnp.einsum("btd,bsd->bts", q, k)
    w = jax.nn.softmax(s, axis=-1)
    a = jnp.einsum("bts,bsd->btd", w, v)
    a = a.transpose(1, 0, 2).reshape(tgt_len, bsz, e)
    out = a @ mod.out_proj_weight.T + mod.out_proj_bias
    return out, w


if __name__ == "__main__":
    # keep the XLA reference at f32 matmul precision so parity checks are tight
    jax.config.update("jax_default_matmul_precision", "highest")

    key = jax.random.PRNGKey(0)
    k_param, k_x = jax.random.split(key)

    seq, batch, embed_dim, num_heads = 8, 2, 32, 4
    mha = MultiheadAttentionPallas(embed_dim, num_heads, k_param)
    x = jax.random.normal(k_x, (seq, batch, embed_dim), jnp.float32)

    out, weights = mha(x, x, x, need_weights=True)
    out = jax.block_until_ready(out)
    weights = jax.block_until_ready(weights)

    ref_out, ref_w = reference_forward(mha, x)
    assert out.shape == (seq, batch, embed_dim)
    assert weights.shape == (batch * num_heads, seq, seq)
    assert jnp.allclose(out, ref_out, atol=2e-3, rtol=2e-3)
    assert jnp.allclose(weights, ref_w, atol=2e-3, rtol=2e-3)

    # need_weights=False fast path: flash-style S-tiled kernel with approximate
    # reciprocal + post-matmul normalization (skips the O(T*S) writeback).
    out_nw, none_w = mha(x, x, x, need_weights=False)
    out_nw = jax.block_until_ready(out_nw)
    assert none_w is None
    assert jnp.allclose(out_nw, ref_out, atol=5e-3, rtol=5e-3)

    print("KERNEL_OK")
</pallas_src>

<mosaic_0001>
module attributes {stable_mosaic.version = 11 : i64} {
  func.func @_linear_kernel(%arg0: i32, %arg1: i32, %arg2: i32, %arg3: memref<16x32xf32, #tpu.memory_space<vmem>>, %arg4: memref<32x96xf32, #tpu.memory_space<vmem>>, %arg5: memref<1x96xf32, #tpu.memory_space<vmem>>, %arg6: memref<16x96xf32, #tpu.memory_space<vmem>>, %arg7: memref<16x96xf32, #tpu.memory_space<vmem>>) attributes {dimension_semantics = [#tpu.dimension_semantics<parallel>, #tpu.dimension_semantics<parallel>, #tpu.dimension_semantics<arbitrary>], iteration_bounds = array<i64: 1, 1, 1>, scalar_prefetch = 0 : i64, scratch_operands = 1 : i64, tpu.core_type = #tpu.core_type<tc>, window_params = [{transform_indices = @transform_0, window_bounds = array<i64: 16, 32>}, {transform_indices = @transform_1, window_bounds = array<i64: 32, 96>}, {transform_indices = @transform_2, window_bounds = array<i64: 1, 96>}, {transform_indices = @transform_3, window_bounds = array<i64: 16, 96>}]} {
    %c0_i32 = arith.constant 0 : i32
    %0 = arith.cmpi eq, %arg2, %c0_i32 : i32
    %1 = arith.extui %0 : i1 to i32
    %c0_i32_0 = arith.constant 0 : i32
    %2 = arith.cmpi ne, %1, %c0_i32_0 : i32
    scf.if %2 {
      %cst_10 = arith.constant 0.000000e+00 : f32
      %12 = vector.broadcast %cst_10 : f32 to vector<16x96xf32>
      %c0_11 = arith.constant 0 : index
      %c0_12 = arith.constant 0 : index
      %13 = vector.load %arg7[%c0_11, %c0_12] : memref<16x96xf32, #tpu.memory_space<vmem>>, vector<16x96xf32>
      tpu.vector_store %arg7[%c0_11, %c0_12], %12 {strides = array<i32>} : memref<16x96xf32, #tpu.memory_space<vmem>>, vector<16x96xf32>,
    } else {
    }
    %c0 = arith.constant 0 : index
    %c0_1 = arith.constant 0 : index
    %3 = vector.load %arg7[%c0, %c0_1] : memref<16x96xf32, #tpu.memory_space<vmem>>, vector<16x96xf32>
    %c0_2 = arith.constant 0 : index
    %c0_3 = arith.constant 0 : index
    %4 = vector.load %arg3[%c0_2, %c0_3] : memref<16x32xf32, #tpu.memory_space<vmem>>, vector<16x32xf32>
    %c0_4 = arith.constant 0 : index
    %c0_5 = arith.constant 0 : index
    %5 = vector.load %arg4[%c0_4, %c0_5] : memref<32x96xf32, #tpu.memory_space<vmem>>, vector<32x96xf32>
    %cst = arith.constant dense<0.000000e+00> : vector<16x96xf32>
    %6 = tpu.matmul %4, %5, %cst {dimension_numbers = #tpu.dot_dimension_numbers<[1], [0], [0], [1], [0, 0, 1, 1], [], []>, precision = #tpu.contract_precision<fp32>} : vector<16x32xf32>, vector<32x96xf32>, vector<16x96xf32> -> vector<16x96xf32>
    %7 = arith.addf %3, %6 : vector<16x96xf32>
    %c0_6 = arith.constant 0 : index
    %c0_7 = arith.constant 0 : index
    %8 = vector.load %arg7[%c0_6, %c0_7] : memref<16x96xf32, #tpu.memory_space<vmem>>, vector<16x96xf32>
    tpu.vector_store %arg7[%c0_6, %c0_7], %7 {strides = array<i32>} : memref<16x96xf32, #tpu.memory_space<vmem>>, vector<16x96xf32>,
    %c0_i32_8 = arith.constant 0 : i32
    %9 = arith.cmpi eq, %arg2, %c0_i32_8 : i32
    %10 = arith.extui %9 : i1 to i32
    %c0_i32_9 = arith.constant 0 : i32
    %11 = arith.cmpi ne, %10, %c0_i32_9 : i32
    scf.if %11 {
      %c0_10 = arith.constant 0 : index
      %c0_11 = arith.constant 0 : index
      %12 = vector.load %arg7[%c0_10, %c0_11] : memref<16x96xf32, #tpu.memory_space<vmem>>, vector<16x96xf32>
      %c0_12 = arith.constant 0 : index
      %c0_13 = arith.constant 0 : index
      %13 = vector.load %arg5[%c0_12, %c0_13] : memref<1x96xf32, #tpu.memory_space<vmem>>, vector<1x96xf32>
      %14 = vector.broadcast %13 : vector<1x96xf32> to vector<16x96xf32>
      %15 = arith.addf %12, %14 : vector<16x96xf32>
      %c0_14 = arith.constant 0 : index
      %c0_15 = arith.constant 0 : index
      %16 = vector.load %arg6[%c0_14, %c0_15] : memref<16x96xf32, #tpu.memory_space<vmem>>, vector<16x96xf32>
      tpu.vector_store %arg6[%c0_14, %c0_15], %15 {strides = array<i32>} : memref<16x96xf32, #tpu.memory_space<vmem>>, vector<16x96xf32>,
    } else {
    }
    return
  }
  func.func @transform_0(%arg0: i32, %arg1: i32, %arg2: i32) -> (i32, i32) {
    %c0_i32 = arith.constant 0 : i32
    return %arg0, %arg2 : i32, i32
  }
  func.func @transform_1(%arg0: i32, %arg1: i32, %arg2: i32) -> (i32, i32) {
    %c0_i32 = arith.constant 0 : i32
    return %arg2, %arg1 : i32, i32
  }
  func.func @transform_2(%arg0: i32, %arg1: i32, %arg2: i32) -> (i32, i32) {
    %c0_i32 = arith.constant 0 : i32
    %c0_i32_0 = arith.constant 0 : i32
    return %c0_i32, %arg1 : i32, i32
  }
  func.func @transform_3(%arg0: i32, %arg1: i32, %arg2: i32) -> (i32, i32) {
    %c0_i32 = arith.constant 0 : i32
    return %arg0, %arg1 : i32, i32
  }
}

</mosaic_0001>

<llo_original>
// kernel: tpu_custom_call.1
$region0: #{tpu_custom_call.1}
  #allocation0 [shape = 'u32[]', space=smem, size = 0x4, offset = 0x4, fixed_abs, tag = 'smem constant byte address 0x4 - core index']
  #allocation1 [shape = 'u32[144,128]{1,0:T(1,128)}', space=vmem, size = 0x12000, scoped, tag = 'internal scratch']
  #allocation2 [shape = 'f32[16,96]{1,0:T(8,128)}', space=vmem, size = 0x2000, scoped, tag = 'scratch operand']
  %s0 = inlined_call_operand.hbm [shape: f32[16,32], index: 0, kind: input, shape index: {}]
  %s1 = inlined_call_operand.hbm [shape: f32[32,96], index: 1, kind: input, shape index: {}]
  %s2 = inlined_call_operand.vmem [shape: f32[1,96], index: 2, kind: input, shape index: {}]
  %s3 = inlined_call_operand.hbm [shape: f32[16,96], index: 3, kind: output, shape index: {}]
  %s4 = sld [smem:[#allocation0]]
  $region38: #{tpu_custom_call.1} parent=0
    _
  %s6 = ssub.s32 1, %s4
  %s7 = scalar_select 0, %s6, %s4
  $region1: #{tpu_custom_call.1} parent=0
    #allocation3 [shape = 'u8[8192]{0}', space=vmem, size = 0x2000, scoped, tag = 'input window, operand 0, single buffered']
    #allocation4 [shape = 's32[1]{0}', space=sflag, size = 0x4, scoped, tag = 'scoped memory for tpu_custom_call.1']
    #allocation5 [shape = 's32[1]{0}', space=sflag, size = 0x4, scoped, tag = 'scoped memory for tpu_custom_call.1']
    #allocation6 [shape = 'u8[16384]{0}', space=vmem, size = 0x4000, scoped, tag = 'input window, operand 1, single buffered']
    #allocation7 [shape = 's32[1]{0}', space=sflag, size = 0x4, scoped, tag = 'scoped memory for tpu_custom_call.1']
    #allocation8 [shape = 'u8[8192]{0}', space=vmem, size = 0x2000, scoped, tag = 'output window, operand 0, single buffered']
    %8 = vsyncpa [#allocation4], 0
    %9 = vsyncpa [#allocation7], 0
    %10 = vsyncpa [#allocation5], 0
    // Predicated region
    $region2: #{tpu_custom_call.1} parent=1 // pred_check
      _
    $region3: #{tpu_custom_call.1} parent=1 // pred_check_branch
      %12 = sbr.rel (0) target = $region5
    $region4: #{tpu_custom_call.1} parent=1 // pred_region
      %s14 = ssub.s32 256, 256
      %15 = vsyncadd [#allocation4], %s14
      %s16 = sshll.u32 [#allocation3], 4
      %s17 = int_to_ptr.vmem [resolvable:$true] %s16
      %22 = dma.hbm_to_vmem [thread:$0]  %s0, 256, %s17, [#allocation4], 128, 128, 8
    $region5: #{tpu_custom_call.1} parent=1 // pred_fallthru
      _
    // Predicated region
    $region6: #{tpu_custom_call.1} parent=1 // pred_check
      _
    $region7: #{tpu_custom_call.1} parent=1 // pred_check_branch
      %24 = sbr.rel (0) target = $region9
    $region8: #{tpu_custom_call.1} parent=1 // pred_region
      %s26 = ssub.s32 512, 512
      %27 = vsyncadd [#allocation7], %s26
      %s28 = sshll.u32 [#allocation6], 4
      %s29 = int_to_ptr.vmem [resolvable:$true] %s28
      %34 = dma.hbm_to_vmem [thread:$0]  %s1, 512, %s29, [#allocation7], 128, 128, 8
    $region9: #{tpu_custom_call.1} parent=1 // pred_fallthru
      _
    // Predicated region
    $region10: #{tpu_custom_call.1} parent=1 // pred_check
      _
    $region11: #{tpu_custom_call.1} parent=1 // pred_check_branch
      %36 = sbr.rel (0) target = $region13
    $region12: #{tpu_custom_call.1} parent=1 // pred_region
      _
    $region13: #{tpu_custom_call.1} parent=1 // pred_fallthru
      _
    // Predicated region
    $region14: #{tpu_custom_call.1} parent=1 // pred_check
      _
    $region15: #{tpu_custom_call.1} parent=1 // pred_check_branch
      %38 = sbr.rel (0) target = $region17
    $region16: #{tpu_custom_call.1} parent=1 // pred_region
      %39 = dma.done [#allocation4], 256
    $region17: #{tpu_custom_call.1} parent=1 // pred_fallthru
      _
    // Predicated region
    $region18: #{tpu_custom_call.1} parent=1 // pred_check
      _
    $region19: #{tpu_custom_call.1} parent=1 // pred_check_branch
      %41 = sbr.rel (0) target = $region21
    $region20: #{tpu_custom_call.1} parent=1 // pred_region
      %42 = dma.done [#allocation7], 512
    $region21: #{tpu_custom_call.1} parent=1 // pred_fallthru
      _
    %p43 = scmp.eq.s32.totalorder 0, 0
    // Predicated region
    $region22: #{tpu_custom_call.1} parent=1 // pred_check
      %p44 = pneg %p43
    $region23: #{tpu_custom_call.1} parent=1 // pred_check_branch
      %46 = sbr.rel (%p44) target = $region25
    $region24: #{tpu_custom_call.1} parent=1 // pred_region
      %vm47 = vcmask 785408
      %48 = vst.msk [vmem:[#allocation2] sm:$0xff] %vm47, 0.0
      %49 = vst.msk [vmem:[#allocation2 + $0x8] sm:$0xff] %vm47, 0.0
    $region25: #{tpu_custom_call.1} parent=1 // pred_fallthru
      _
    %v50 = vld [vmem:[#allocation2] sm:$0xff]
    %v51 = vld [vmem:[#allocation2 + $0x8] sm:$0xff]
    %v52 = vld [vmem:[#allocation3] sm:$0xff]
    %v53 = vld [vmem:[#allocation3 + $0x8] sm:$0xff]
    %v54 = vld [vmem:[#allocation6] sm:$0xff]
    %v55 = vld [vmem:[#allocation6 + $0x8] sm:$0xff]
    %v56 = vld [vmem:[#allocation6 + $0x10] sm:$0xff]
    %v57 = vld [vmem:[#allocation6 + $0x18] sm:$0xff]
    %vm58 = vcmask 261120
    %v60 = vsel %vm58, %v52, 0
    %v63 = vsel %vm58, %v53, 0
    %65 = vmatprep.subr.mxu0 0.0
    %v66 = vand.u32 %v54, 4294901760
    %67 = vmatpush1.msra.mxu0 %v66
    %68 = vmatprep.subr.mxu0 0.0
    %v69 = vand.u32 %v55, 4294901760
    %70 = vmatpush1.msra.mxu0 %v69
    %71 = vmatprep.subr.mxu0 0.0
    %v72 = vand.u32 %v56, 4294901760
    %73 = vmatpush1.msra.mxu0 %v72
    %74 = vmatprep.subr.mxu0 0.0
    %v75 = vand.u32 %v57, 4294901760
    %76 = vmatpush1.msra.mxu0 %v75
    %77 = vmatprep.subr.mxu0 0.0
    %78 = vmatpush1.msra.mxu0 0.0
    %79 = vmatprep.subr.mxu0 0.0
    %80 = vmatpush1.msra.mxu0 0.0
    %81 = vmatprep.subr.mxu0 0.0
    %82 = vmatpush1.msra.mxu0 0.0
    %83 = vmatprep.subr.mxu0 0.0
    %84 = vmatpush1.msra.mxu0 0.0
    %85 = vmatprep.subr.mxu0 0.0
    %86 = vmatpush1.msra.mxu0 0.0
    %87 = vmatprep.subr.mxu0 0.0
    %88 = vmatpush1.msra.mxu0 0.0
    %89 = vmatprep.subr.mxu0 0.0
    %90 = vmatpush1.msra.mxu0 0.0
    %91 = vmatprep.subr.mxu0 0.0
    %92 = vmatpush1.msra.mxu0 0.0
    %93 = vmatprep.subr.mxu0 0.0
    %94 = vmatpush1.msra.mxu0 0.0
    %95 = vmatprep.subr.mxu0 0.0
    %96 = vmatpush1.msra.mxu0 0.0
    %97 = vmatprep.subr.mxu0 0.0
    %98 = vmatpush1.msra.mxu0 0.0
    %99 = vmatprep.subr.mxu0 0.0
    %100 = vmatpush1.msra.mxu0 0.0
    %101 = vmatprep.subr.mxu0 0.0
    %102 = vmatpush1.msra.mxu0 0.0
    %103 = vmatprep.subr.mxu0 0.0
    %104 = vmatpush1.msra.mxu0 0.0
    %105 = vmatprep.subr.mxu0 0.0
    %106 = vmatpush1.msra.mxu0 0.0
    %107 = vmatprep.subr.mxu0 0.0
    %108 = vmatpush1.msra.mxu0 0.0
    %109 = vmatprep.subr.mxu0 0.0
    %110 = vmatpush1.msra.mxu0 0.0
    %111 = vmatprep.subr.mxu0 0.0
    %112 = vmatpush1.msra.mxu0 0.0
    %113 = vmatprep.subr.mxu0 0.0
    %114 = vmatpush1.msra.mxu0 0.0
    %115 = vmatprep.subr.mxu0 0.0
    %116 = vmatpush1.msra.mxu0 0.0
    %117 = vmatprep.subr.mxu0 0.0
    %118 = vmatpush1.msra.mxu0 0.0
    %119 = vmatprep.subr.mxu0 0.0
    %120 = vmatpush1.msra.mxu0 0.0
    %121 = vmatprep.subr.mxu0 0.0
    %122 = vmatpush1.msra.mxu0 0.0
    %123 = vmatprep.subr.mxu0 0.0
    %124 = vmatpush1.msra.mxu0 0.0
    %125 = vmatprep.subr.mxu0 0.0
    %126 = vmatpush1.msra.mxu0 0.0
    %127 = vmatprep.subr.mxu0 0.0
    %128 = vmatpush1.msra.mxu0 0.0
    %129 = vmatprep.subr.mxu0 0.0
    %130 = vmatpush1.msra.mxu0 0.0
    %131 = vmatprep.subr.mxu0 0.0
    %132 = vmatpush1.msra.mxu0 0.0
    %133 = vmatprep.mubr.f32.mxu0 0.0
    %v134 = vand.u32 %v60, 4294901760
    %v135 = vsub.f32 %v60, %v134
    %v136 = vand.u32 %v135, 4294901760
    %v137 = vsub.f32 %v135, %v136
    %v138 = vand.u32 %v137, 4294901760
    %139 = vmatmul.mubr.f32.gmra.mrb[0].mxu0 %v138
    %v140 = vpop.f32.mrb[0].mxu0
    %v141 = vadd.f32 0.0, %v140
    %v142 = vpop.f32.mrb[0].mxu0
    %143 = vmatprep.mubr.f32.mxu0 0.0
    %v144 = vand.u32 %v63, 4294901760
    %v145 = vsub.f32 %v63, %v144
    %v146 = vand.u32 %v145, 4294901760
    %v147 = vsub.f32 %v145, %v146
    %v148 = vand.u32 %v147, 4294901760
    %149 = vmatmul.mubr.f32.gmra.mrb[0].mxu0 %v148
    %v150 = vpop.f32.mrb[0].mxu0
    %v151 = vadd.f32 0.0, %v150
    %v152 = vpop.f32.mrb[0].mxu0
    %153 = vdwg.mxu0
    %154 = vmatprep.subr.mxu0 0.0
    %v155 = vand.u32 %v54, 4294901760
    %v156 = vsub.f32 %v54, %v155
    %v157 = vand.u32 %v156, 4294901760
    %v158 = vsub.f32 %v156, %v157
    %v159 = vand.u32 %v158, 4294901760
    %160 = vmatpush1.msra.mxu0 %v159
    %161 = vmatprep.subr.mxu0 0.0
    %v162 = vand.u32 %v55, 4294901760
    %v163 = vsub.f32 %v55, %v162
    %v164 = vand.u32 %v163, 4294901760
    %v165 = vsub.f32 %v163, %v164
    %v166 = vand.u32 %v165, 4294901760
    %167 = vmatpush1.msra.mxu0 %v166
    %168 = vmatprep.subr.mxu0 0.0
    %v169 = vand.u32 %v56, 4294901760
    %v170 = vsub.f32 %v56, %v169
    %v171 = vand.u32 %v170, 4294901760
    %v172 = vsub.f32 %v170, %v171
    %v173 = vand.u32 %v172, 4294901760
    %174 = vmatpush1.msra.mxu0 %v173
    %175 = vmatprep.subr.mxu0 0.0
    %v176 = vand.u32 %v57, 4294901760
    %v177 = vsub.f32 %v57, %v176
    %v178 = vand.u32 %v177, 4294901760
    %v179 = vsub.f32 %v177, %v178
    %v180 = vand.u32 %v179, 4294901760
    %181 = vmatpush1.msra.mxu0 %v180
    %182 = vmatprep.subr.mxu0 0.0
    %183 = vmatpush1.msra.mxu0 0.0
    %184 = vmatprep.subr.mxu0 0.0
    %185 = vmatpush1.msra.mxu0 0.0
    %186 = vmatprep.subr.mxu0 0.0
    %187 = vmatpush1.msra.mxu0 0.0
    %188 = vmatprep.subr.mxu0 0.0
    %189 = vmatpush1.msra.mxu0 0.0
    %190 = vmatprep.subr.mxu0 0.0
    %191 = vmatpush1.msra.mxu0 0.0
    %192 = vmatprep.subr.mxu0 0.0
    %193 = vmatpush1.msra.mxu0 0.0
    %194 = vmatprep.subr.mxu0 0.0
    %195 = vmatpush1.msra.mxu0 0.0
    %196 = vmatprep.subr.mxu0 0.0
    %197 = vmatpush1.msra.mxu0 0.0
    %198 = vmatprep.subr.mxu0 0.0
    %199 = vmatpush1.msra.mxu0 0.0
    %200 = vmatprep.subr.mxu0 0.0
    %201 = vmatpush1.msra.mxu0 0.0
    %202 = vmatprep.subr.mxu0 0.0
    %203 = vmatpush1.msra.mxu0 0.0
    %204 = vmatprep.subr.mxu0 0.0
    %205 = vmatpush1.msra.mxu0 0.0
    %206 = vmatprep.subr.mxu0 0.0
    %207 = vmatpush1.msra.mxu0 0.0
    %208 = vmatprep.subr.mxu0 0.0
    %209 = vmatpush1.msra.mxu0 0.0
    %210 = vmatprep.subr.mxu0 0.0
    %211 = vmatpush1.msra.mxu0 0.0
    %212 = vmatprep.subr.mxu0 0.0
    %213 = vmatpush1.msra.mxu0 0.0
    %214 = vmatprep.subr.mxu0 0.0
    %215 = vmatpush1.msra.mxu0 0.0
    %216 = vmatprep.subr.mxu0 0.0
    %217 = vmatpush1.msra.mxu0 0.0
    %218 = vmatprep.subr.mxu0 0.0
    %219 = vmatpush1.msra.mxu0 0.0
    %220 = vmatprep.subr.mxu0 0.0
    %221 = vmatpush1.msra.mxu0 0.0
    %222 = vmatprep.subr.mxu0 0.0
    %223 = vmatpush1.msra.mxu0 0.0
    %224 = vmatprep.subr.mxu0 0.0
    %225 = vmatpush1.msra.mxu0 0.0
    %226 = vmatprep.subr.mxu0 0.0
    %227 = vmatpush1.msra.mxu0 0.0
    %228 = vmatprep.subr.mxu0 0.0
    %229 = vmatpush1.msra.mxu0 0.0
    %230 = vmatprep.subr.mxu0 0.0
    %231 = vmatpush1.msra.mxu0 0.0
    %232 = vmatprep.subr.mxu0 0.0
    %233 = vmatpush1.msra.mxu0 0.0
    %234 = vmatprep.subr.mxu0 0.0
    %235 = vmatpush1.msra.mxu0 0.0
    %236 = vmatprep.subr.mxu0 0.0
    %237 = vmatpush1.msra.mxu0 0.0
    %238 = vmatprep.mubr.f32.mxu0 0.0
    %v239 = vand.u32 %v60, 4294901760
    %240 = vmatmul.mubr.f32.gmra.mrb[0].mxu0 %v239
    %v241 = vpop.f32.mrb[0].mxu0
    %v242 = vadd.f32 %v141, %v241
    %v243 = vpop.f32.mrb[0].mxu0
    %244 = vmatprep.mubr.f32.mxu0 0.0
    %v245 = vand.u32 %v63, 4294901760
    %246 = vmatmul.mubr.f32.gmra.mrb[0].mxu0 %v245
    %v247 = vpop.f32.mrb[0].mxu0
    %v248 = vadd.f32 %v151, %v247
    %v249 = vpop.f32.mrb[0].mxu0
    %250 = vdwg.mxu0
    %251 = vmatprep.subr.mxu0 0.0
    %v252 = vand.u32 %v54, 4294901760
    %v253 = vsub.f32 %v54, %v252
    %254 = vmatpush1.msra.mxu0 %v253
    %255 = vmatprep.subr.mxu0 0.0
    %v256 = vand.u32 %v55, 4294901760
    %v257 = vsub.f32 %v55, %v256
    %258 = vmatpush1.msra.mxu0 %v257
    %259 = vmatprep.subr.mxu0 0.0
    %v260 = vand.u32 %v56, 4294901760
    %v261 = vsub.f32 %v56, %v260
    %262 = vmatpush1.msra.mxu0 %v261
    %263 = vmatprep.subr.mxu0 0.0
    %v264 = vand.u32 %v57, 4294901760
    %v265 = vsub.f32 %v57, %v264
    %266 = vmatpush1.msra.mxu0 %v265
    %267 = vmatprep.subr.mxu0 0.0
    %268 = vmatpush1.msra.mxu0 0.0
    %269 = vmatprep.subr.mxu0 0.0
    %270 = vmatpush1.msra.mxu0 0.0
    %271 = vmatprep.subr.mxu0 0.0
    %272 = vmatpush1.msra.mxu0 0.0
    %273 = vmatprep.subr.mxu0 0.0
    %274 = vmatpush1.msra.mxu0 0.0
    %275 = vmatprep.subr.mxu0 0.0
    %276 = vmatpush1.msra.mxu0 0.0
    %277 = vmatprep.subr.mxu0 0.0
    %278 = vmatpush1.msra.mxu0 0.0
    %279 = vmatprep.subr.mxu0 0.0
    %280 = vmatpush1.msra.mxu0 0.0
    %281 = vmatprep.subr.mxu0 0.0
    %282 = vmatpush1.msra.mxu0 0.0
    %283 = vmatprep.subr.mxu0 0.0
    %284 = vmatpush1.msra.mxu0 0.0
    %285 = vmatprep.subr.mxu0 0.0
    %286 = vmatpush1.msra.mxu0 0.0
    %287 = vmatprep.subr.mxu0 0.0
    %288 = vmatpush1.msra.mxu0 0.0
    %289 = vmatprep.subr.mxu0 0.0
    %290 = vmatpush1.msra.mxu0 0.0
    %291 = vmatprep.subr.mxu0 0.0
    %292 = vmatpush1.msra.mxu0 0.0
    %293 = vmatprep.subr.mxu0 0.0
    %294 = vmatpush1.msra.mxu0 0.0
    %295 = vmatprep.subr.mxu0 0.0
    %296 = vmatpush1.msra.mxu0 0.0
    %297 = vmatprep.subr.mxu0 0.0
    %298 = vmatpush1.msra.mxu0 0.0
    %299 = vmatprep.subr.mxu0 0.0
    %300 = vmatpush1.msra.mxu0 0.0
    %301 = vmatprep.subr.mxu0 0.0
    %302 = vmatpush1.msra.mxu0 0.0
    %303 = vmatprep.subr.mxu0 0.0
    %304 = vmatpush1.msra.mxu0 0.0
    %305 = vmatprep.subr.mxu0 0.0
    %306 = vmatpush1.msra.mxu0 0.0
    %307 = vmatprep.subr.mxu0 0.0
    %308 = vmatpush1.msra.mxu0 0.0
    %309 = vmatprep.subr.mxu0 0.0
    %310 = vmatpush1.msra.mxu0 0.0
    %311 = vmatprep.subr.mxu0 0.0
    %312 = vmatpush1.msra.mxu0 0.0
    %313 = vmatprep.subr.mxu0 0.0
    %314 = vmatpush1.msra.mxu0 0.0
    %315 = vmatprep.subr.mxu0 0.0
    %316 = vmatpush1.msra.mxu0 0.0
    %317 = vmatprep.subr.mxu0 0.0
    %318 = vmatpush1.msra.mxu0 0.0
    %319 = vmatprep.subr.mxu0 0.0
    %320 = vmatpush1.msra.mxu0 0.0
    %321 = vmatprep.subr.mxu0 0.0
    %322 = vmatpush1.msra.mxu0 0.0
    %323 = vmatprep.mubr.f32.mxu0 0.0
    %v324 = vand.u32 %v60, 4294901760
    %v325 = vsub.f32 %v60, %v324
    %326 = vmatmul.mubr.f32.gmra.mrb[0].mxu0 %v325
    %v327 = vpop.f32.mrb[0].mxu0
    %v328 = vadd.f32 %v242, %v327
    %v329 = vpop.f32.mrb[0].mxu0
    %330 = vmatprep.mubr.f32.mxu0 0.0
    %v331 = vand.u32 %v63, 4294901760
    %v332 = vsub.f32 %v63, %v331
    %333 = vmatmul.mubr.f32.gmra.mrb[0].mxu0 %v332
    %v334 = vpop.f32.mrb[0].mxu0
    %v335 = vadd.f32 %v248, %v334
    %v336 = vpop.f32.mrb[0].mxu0
    %337 = vdwg.mxu0
    %338 = vmatprep.subr.mxu0 0.0
    %v339 = vand.u32 %v54, 4294901760
    %340 = vmatpush1.msra.mxu0 %v339
    %341 = vmatprep.subr.mxu0 0.0
    %v342 = vand.u32 %v55, 4294901760
    %343 = vmatpush1.msra.mxu0 %v342
    %344 = vmatprep.subr.mxu0 0.0
    %v345 = vand.u32 %v56, 4294901760
    %346 = vmatpush1.msra.mxu0 %v345
    %347 = vmatprep.subr.mxu0 0.0
    %v348 = vand.u32 %v57, 4294901760
    %349 = vmatpush1.msra.mxu0 %v348
    %350 = vmatprep.subr.mxu0 0.0
    %351 = vmatpush1.msra.mxu0 0.0
    %352 = vmatprep.subr.mxu0 0.0
    %353 = vmatpush1.msra.mxu0 0.0
    %354 = vmatprep.subr.mxu0 0.0
    %355 = vmatpush1.msra.mxu0 0.0
    %356 = vmatprep.subr.mxu0 0.0
    %357 = vmatpush1.msra.mxu0 0.0
    %358 = vmatprep.subr.mxu0 0.0
    %359 = vmatpush1.msra.mxu0 0.0
    %360 = vmatprep.subr.mxu0 0.0
    %361 = vmatpush1.msra.mxu0 0.0
    %362 = vmatprep.subr.mxu0 0.0
    %363 = vmatpush1.msra.mxu0 0.0
    %364 = vmatprep.subr.mxu0 0.0
    %365 = vmatpush1.msra.mxu0 0.0
    %366 = vmatprep.subr.mxu0 0.0
    %367 = vmatpush1.msra.mxu0 0.0
    %368 = vmatprep.subr.mxu0 0.0
    %369 = vmatpush1.msra.mxu0 0.0
    %370 = vmatprep.subr.mxu0 0.0
    %371 = vmatpush1.msra.mxu0 0.0
    %372 = vmatprep.subr.mxu0 0.0
    %373 = vmatpush1.msra.mxu0 0.0
    %374 = vmatprep.subr.mxu0 0.0
    %375 = vmatpush1.msra.mxu0 0.0
    %376 = vmatprep.subr.mxu0 0.0
    %377 = vmatpush1.msra.mxu0 0.0
    %378 = vmatprep.subr.mxu0 0.0
    %379 = vmatpush1.msra.mxu0 0.0
    %380 = vmatprep.subr.mxu0 0.0
    %381 = vmatpush1.msra.mxu0 0.0
    %382 = vmatprep.subr.mxu0 0.0
    %383 = vmatpush1.msra.mxu0 0.0
    %384 = vmatprep.subr.mxu0 0.0
    %385 = vmatpush1.msra.mxu0 0.0
    %386 = vmatprep.subr.mxu0 0.0
    %387 = vmatpush1.msra.mxu0 0.0
    %388 = vmatprep.subr.mxu0 0.0
    %389 = vmatpush1.msra.mxu0 0.0
    %390 = vmatprep.subr.mxu0 0.0
    %391 = vmatpush1.msra.mxu0 0.0
    %392 = vmatprep.subr.mxu0 0.0
    %393 = vmatpush1.msra.mxu0 0.0
    %394 = vmatprep.subr.mxu0 0.0
    %395 = vmatpush1.msra.mxu0 0.0
    %396 = vmatprep.subr.mxu0 0.0
    %397 = vmatpush1.msra.mxu0 0.0
    %398 = vmatprep.subr.mxu0 0.0
    %399 = vmatpush1.msra.mxu0 0.0
    %400 = vmatprep.subr.mxu0 0.0
    %401 = vmatpush1.msra.mxu0 0.0
    %402 = vmatprep.subr.mxu0 0.0
    %403 = vmatpush1.msra.mxu0 0.0
    %404 = vmatprep.subr.mxu0 0.0
    %405 = vmatpush1.msra.mxu0 0.0
    %406 = vmatprep.mubr.f32.mxu0 0.0
    %v407 = vand.u32 %v60, 4294901760
    %v408 = vsub.f32 %v60, %v407
    %v409 = vand.u32 %v408, 4294901760
    %410 = vmatmul.mubr.f32.gmra.mrb[0].mxu0 %v409
    %v411 = vpop.f32.mrb[0].mxu0
    %v412 = vadd.f32 %v328, %v411
    %v413 = vpop.f32.mrb[0].mxu0
    %414 = vmatprep.mubr.f32.mxu0 0.0
    %v415 = vand.u32 %v63, 4294901760
    %v416 = vsub.f32 %v63, %v415
    %v417 = vand.u32 %v416, 4294901760
    %418 = vmatmul.mubr.f32.gmra.mrb[0].mxu0 %v417
    %v419 = vpop.f32.mrb[0].mxu0
    %v420 = vadd.f32 %v335, %v419
    %v421 = vpop.f32.mrb[0].mxu0
    %422 = vdwg.mxu0
    %423 = vmatprep.subr.mxu0 0.0
    %v424 = vand.u32 %v54, 4294901760
    %v425 = vsub.f32 %v54, %v424
    %v426 = vand.u32 %v425, 4294901760
    %427 = vmatpush1.msra.mxu0 %v426
    %428 = vmatprep.subr.mxu0 0.0
    %v429 = vand.u32 %v55, 4294901760
    %v430 = vsub.f32 %v55, %v429
    %v431 = vand.u32 %v430, 4294901760
    %432 = vmatpush1.msra.mxu0 %v431
    %433 = vmatprep.subr.mxu0 0.0
    %v434 = vand.u32 %v56, 4294901760
    %v435 = vsub.f32 %v56, %v434
    %v436 = vand.u32 %v435, 4294901760
    %437 = vmatpush1.msra.mxu0 %v436
    %438 = vmatprep.subr.mxu0 0.0
    %v439 = vand.u32 %v57, 4294901760
    %v440 = vsub.f32 %v57, %v439
    %v441 = vand.u32 %v440, 4294901760
    %442 = vmatpush1.msra.mxu0 %v441
    %443 = vmatprep.subr.mxu0 0.0
    %444 = vmatpush1.msra.mxu0 0.0
    %445 = vmatprep.subr.mxu0 0.0
    %446 = vmatpush1.msra.mxu0 0.0
    %447 = vmatprep.subr.mxu0 0.0
    %448 = vmatpush1.msra.mxu0 0.0
    %449 = vmatprep.subr.mxu0 0.0
    %450 = vmatpush1.msra.mxu0 0.0
    %451 = vmatprep.subr.mxu0 0.0
    %452 = vmatpush1.msra.mxu0 0.0
    %453 = vmatprep.subr.mxu0 0.0
    %454 = vmatpush1.msra.mxu0 0.0
    %455 = vmatprep.subr.mxu0 0.0
    %456 = vmatpush1.msra.mxu0 0.0
    %457 = vmatprep.subr.mxu0 0.0
    %458 = vmatpush1.msra.mxu0 0.0
    %459 = vmatprep.subr.mxu0 0.0
    %460 = vmatpush1.msra.mxu0 0.0
    %461 = vmatprep.subr.mxu0 0.0
    %462 = vmatpush1.msra.mxu0 0.0
    %463 = vmatprep.subr.mxu0 0.0
    %464 = vmatpush1.msra.mxu0 0.0
    %465 = vmatprep.subr.mxu0 0.0
    %466 = vmatpush1.msra.mxu0 0.0
    %467 = vmatprep.subr.mxu0 0.0
    %468 = vmatpush1.msra.mxu0 0.0
    %469 = vmatprep.subr.mxu0 0.0
    %470 = vmatpush1.msra.mxu0 0.0
    %471 = vmatprep.subr.mxu0 0.0
    %472 = vmatpush1.msra.mxu0 0.0
    %473 = vmatprep.subr.mxu0 0.0
    %474 = vmatpush1.msra.mxu0 0.0
    %475 = vmatprep.subr.mxu0 0.0
    %476 = vmatpush1.msra.mxu0 0.0
    %477 = vmatprep.subr.mxu0 0.0
    %478 = vmatpush1.msra.mxu0 0.0
    %479 = vmatprep.subr.mxu0 0.0
    %480 = vmatpush1.msra.mxu0 0.0
    %481 = vmatprep.subr.mxu0 0.0
    %482 = vmatpush1.msra.mxu0 0.0
    %483 = vmatprep.subr.mxu0 0.0
    %484 = vmatpush1.msra.mxu0 0.0
    %485 = vmatprep.subr.mxu0 0.0
    %486 = vmatpush1.msra.mxu0 0.0
    %487 = vmatprep.subr.mxu0 0.0
    %488 = vmatpush1.msra.mxu0 0.0
    %489 = vmatprep.subr.mxu0 0.0
    %490 = vmatpush1.msra.mxu0 0.0
    %491 = vmatprep.subr.mxu0 0.0
    %492 = vmatpush1.msra.mxu0 0.0
    %493 = vmatprep.subr.mxu0 0.0
    %494 = vmatpush1.msra.mxu0 0.0
    %495 = vmatprep.subr.mxu0 0.0
    %496 = vmatpush1.msra.mxu0 0.0
    %497 = vmatprep.subr.mxu0 0.0
    %498 = vmatpush1.msra.mxu0 0.0
    %499 = vmatprep.mubr.f32.mxu0 0.0
    %v500 = vand.u32 %v60, 4294901760
    %501 = vmatmul.mubr.f32.gmra.mrb[0].mxu0 %v500
    %v502 = vpop.f32.mrb[0].mxu0
    %v503 = vadd.f32 %v412, %v502
    %v504 = vpop.f32.mrb[0].mxu0
    %505 = vmatprep.mubr.f32.mxu0 0.0
    %v506 = vand.u32 %v63, 4294901760
    %507 = vmatmul.mubr.f32.gmra.mrb[0].mxu0 %v506
    %v508 = vpop.f32.mrb[0].mxu0
    %v509 = vadd.f32 %v420, %v508
    %v510 = vpop.f32.mrb[0].mxu0
    %511 = vdwg.mxu0
    %512 = vmatprep.subr.mxu0 0.0
    %v513 = vand.u32 %v54, 4294901760
    %514 = vmatpush1.msra.mxu0 %v513
    %515 = vmatprep.subr.mxu0 0.0
    %v516 = vand.u32 %v55, 4294901760
    %517 = vmatpush1.msra.mxu0 %v516
    %518 = vmatprep.subr.mxu0 0.0
    %v519 = vand.u32 %v56, 4294901760
    %520 = vmatpush1.msra.mxu0 %v519
    %521 = vmatprep.subr.mxu0 0.0
    %v522 = vand.u32 %v57, 4294901760
    %523 = vmatpush1.msra.mxu0 %v522
    %524 = vmatprep.subr.mxu0 0.0
    %525 = vmatpush1.msra.mxu0 0.0
    %526 = vmatprep.subr.mxu0 0.0
    %527 = vmatpush1.msra.mxu0 0.0
    %528 = vmatprep.subr.mxu0 0.0
    %529 = vmatpush1.msra.mxu0 0.0
    %530 = vmatprep.subr.mxu0 0.0
    %531 = vmatpush1.msra.mxu0 0.0
    %532 = vmatprep.subr.mxu0 0.0
    %533 = vmatpush1.msra.mxu0 0.0
    %534 = vmatprep.subr.mxu0 0.0
    %535 = vmatpush1.msra.mxu0 0.0
    %536 = vmatprep.subr.mxu0 0.0
    %537 = vmatpush1.msra.mxu0 0.0
    %538 = vmatprep.subr.mxu0 0.0
    %539 = vmatpush1.msra.mxu0 0.0
    %540 = vmatprep.subr.mxu0 0.0
    %541 = vmatpush1.msra.mxu0 0.0
    %542 = vmatprep.subr.mxu0 0.0
    %543 = vmatpush1.msra.mxu0 0.0
    %544 = vmatprep.subr.mxu0 0.0
    %545 = vmatpush1.msra.mxu0 0.0
    %546 = vmatprep.subr.mxu0 0.0
    %547 = vmatpush1.msra.mxu0 0.0
    %548 = vmatprep.subr.mxu0 0.0
    %549 = vmatpush1.msra.mxu0 0.0
    %550 = vmatprep.subr.mxu0 0.0
    %551 = vmatpush1.msra.mxu0 0.0
    %552 = vmatprep.subr.mxu0 0.0
    %553 = vmatpush1.msra.mxu0 0.0
    %554 = vmatprep.subr.mxu0 0.0
    %555 = vmatpush1.msra.mxu0 0.0
    %556 = vmatprep.subr.mxu0 0.0
    %557 = vmatpush1.msra.mxu0 0.0
    %558 = vmatprep.subr.mxu0 0.0
    %559 = vmatpush1.msra.mxu0 0.0
    %560 = vmatprep.subr.mxu0 0.0
    %561 = vmatpush1.msra.mxu0 0.0
    %562 = vmatprep.subr.mxu0 0.0
    %563 = vmatpush1.msra.mxu0 0.0
    %564 = vmatprep.subr.mxu0 0.0
    %565 = vmatpush1.msra.mxu0 0.0
    %566 = vmatprep.subr.mxu0 0.0
    %567 = vmatpush1.msra.mxu0 0.0
    %568 = vmatprep.subr.mxu0 0.0
    %569 = vmatpush1.msra.mxu0 0.0
    %570 = vmatprep.subr.mxu0 0.0
    %571 = vmatpush1.msra.mxu0 0.0
    %572 = vmatprep.subr.mxu0 0.0
    %573 = vmatpush1.msra.mxu0 0.0
    %574 = vmatprep.subr.mxu0 0.0
    %575 = vmatpush1.msra.mxu0 0.0
    %576 = vmatprep.subr.mxu0 0.0
    %577 = vmatpush1.msra.mxu0 0.0
    %578 = vmatprep.subr.mxu0 0.0
    %579 = vmatpush1.msra.mxu0 0.0
    %580 = vmatprep.mubr.f32.mxu0 0.0
    %v581 = vand.u32 %v60, 4294901760
    %582 = vmatmul.mubr.f32.gmra.mrb[0].mxu0 %v581
    %v583 = vpop.f32.mrb[0].mxu0
    %v584 = vadd.f32 %v503, %v583
    %v585 = vpop.f32.mrb[0].mxu0
    %586 = vmatprep.mubr.f32.mxu0 0.0
    %v587 = vand.u32 %v63, 4294901760
    %588 = vmatmul.mubr.f32.gmra.mrb[0].mxu0 %v587
    %v589 = vpop.f32.mrb[0].mxu0
    %v590 = vadd.f32 %v509, %v589
    %v591 = vpop.f32.mrb[0].mxu0
    %592 = vdwg.mxu0
    %v593 = vadd.f32 %v50, %v584
    %v594 = vadd.f32 %v51, %v590
    %vm595 = vcmask 785408
    %596 = vst.msk [vmem:[#allocation2] sm:$0xff] %vm595, %v593
    %597 = vst.msk [vmem:[#allocation2 + $0x8] sm:$0xff] %vm595, %v594
    // Predicated region
    $region26: #{tpu_custom_call.1} parent=1 // pred_check
      %p598 = pneg %p43
    $region27: #{tpu_custom_call.1} parent=1 // pred_check_branch
      %600 = sbr.rel (%p598) target = $region29
    $region28: #{tpu_custom_call.1} parent=1 // pred_region
      %v601 = vld [vmem:[#allocation2] sm:$0xff]
      %v602 = vld [vmem:[#allocation2 + $0x8] sm:$0xff]
      %v603 = vld [vmem:[%s2] sm:$0x1]
      %v605 = vlaneseq
      %v606 = vshrl.u32 %v605, 7
      %v607 = vsub.s32 0, %v606
      %v608 = vrot.slane %v603, %v607
      %v610 = vadd.f32 %v601, %v608
      %v611 = vadd.f32 %v602, %v608
      %612 = vst.msk [vmem:[#allocation8] sm:$0xff] %vm595, %v610
      %613 = vst.msk [vmem:[#allocation8 + $0x8] sm:$0xff] %vm595, %v611
    $region29: #{tpu_custom_call.1} parent=1 // pred_fallthru
      _
    // Predicated region
    $region30: #{tpu_custom_call.1} parent=1 // pred_check
      _
    $region31: #{tpu_custom_call.1} parent=1 // pred_check_branch
      %615 = sbr.rel (0) target = $region33
    $region32: #{tpu_custom_call.1} parent=1 // pred_region
      %s617 = ssub.s32 256, 256
      %618 = vsyncadd [#allocation5], %s617
      %s619 = sshll.u32 [#allocation8], 4
      %s620 = int_to_ptr.vmem [resolvable:$true] %s619
      %625 = dma.vmem_to_hbm [thread:$0]  %s620, 256, %s3, [#allocation5], 128, 128, 8
    $region33: #{tpu_custom_call.1} parent=1 // pred_fallthru
      _
    // Predicated region
    $region34: #{tpu_custom_call.1} parent=1 // pred_check
      _
    $region35: #{tpu_custom_call.1} parent=1 // pred_check_branch
      %627 = sbr.rel (0) target = $region37
    $region36: #{tpu_custom_call.1} parent=1 // pred_region
      %628 = dma.done [#allocation5], 256
    $region37: #{tpu_custom_call.1} parent=1 // pred_fallthru
      _
    %629 = vsyncpa [#allocation4], 1
    %630 = vsyncpa [#allocation7], 1
    %631 = vsyncpa [#allocation5], 1

</llo_original>
